<compile_context>
chip_gen: v6e
topology: v6e:2x2x1
jax: 0.10.0
libtpu: 0.0.40
codegen_flags: <defaults>
</compile_context>

<pallas_src>
import jax
import jax.numpy as jnp
from jax.experimental import pallas as pl
from jax.experimental.pallas import tpu as pltpu


def batchnorm_kernel(x_ref, gamma_ref, beta_ref, o_ref):
    x = x_ref[...]                                     # (B, TH), f32
    n = x.shape[0]

    # Per-column statistics, reduced to (1, TH) rows.
    mean = jnp.mean(x, axis=0, keepdims=True)          # (1, TH)
    diff = x - mean
    # Unbiased variance (N-1 divisor) to match torch.var default.
    var = jnp.sum(diff * diff, axis=0, keepdims=True) / (n - 1)

    # rsqrt on the (1, TH) row -> EUP traffic scales with H, not B*H.
    inv = jax.lax.rsqrt(var + 1e-6)                    # (1, TH)

    # Fold gamma/beta into a per-column affine: y = x * scale + shift.
    scale = gamma_ref[...] * inv                       # (1, TH)
    shift = beta_ref[...] - mean * scale               # (1, TH)

    o_ref[...] = (x * scale + shift).astype(o_ref.dtype)


def _pick_tile_h(H):
    """Largest lane-dense tile (<=512, multiple of 128) that divides H."""
    for cand in (512, 384, 256, 128):
        if H % cand == 0:
            return cand
    return H  # full-width block: legal even when H < 128 / not a 128 multiple


def batch_normalization(x, gamma, beta):
    """x: (B, H) float32; gamma/beta: (H,) float32."""
    B, H = x.shape
    assert B >= 2, "unbiased variance (N-1 divisor) requires batch >= 2"

    th = _pick_tile_h(H)
    grid = (H // th,)

    gamma2d = gamma.reshape(1, H)
    beta2d = beta.reshape(1, H)

    # TODO(synk): if B grows so large that a (B, TH) f32 block no longer fits
    # VMEM (esp. v7x's 64 MiB), switch to a two-axis grid with a (1, TH)
    # sum/sum-of-squares accumulator (B axis "arbitrary", last in grid).
    return pl.pallas_call(
        batchnorm_kernel,
        out_shape=jax.ShapeDtypeStruct((B, H), x.dtype),
        grid_spec=pl.GridSpec(
            grid=grid,
            in_specs=[
                pl.BlockSpec((B, th), lambda i: (0, i)),   # x column tile
                pl.BlockSpec((1, th), lambda i: (0, i)),   # gamma
                pl.BlockSpec((1, th), lambda i: (0, i)),   # beta
            ],
            out_specs=pl.BlockSpec((B, th), lambda i: (0, i)),
        ),
        compiler_params=pltpu.CompilerParams(
            dimension_semantics=("parallel",),
        ),
    )(x, gamma2d, beta2d)


if __name__ == "__main__":
    key = jax.random.PRNGKey(0)
    B, H = 8, 32                       # small shapes consistent with (batch, hidden_dim)
    x = jax.random.normal(key, (B, H), dtype=jnp.float32)

    # deterministic parameter init, matching nn.Parameter(ones / zeros)
    gamma = jnp.ones((H,), dtype=jnp.float32)
    beta = jnp.zeros((H,), dtype=jnp.float32)

    y = batch_normalization(x, gamma, beta)
    jax.block_until_ready(y)

    # reference check in plain JAX (same semantics as the PyTorch module)
    mean = jnp.mean(x, axis=0)
    var = jnp.var(x, axis=0, ddof=1)
    y_ref = gamma * (x - mean) / jnp.sqrt(var + 1e-6) + beta
    assert jnp.allclose(y, y_ref, atol=1e-5, rtol=1e-5)

    print("KERNEL_OK")
</pallas_src>

<mosaic_0001>
module attributes {stable_mosaic.version = 11 : i64} {
  func.func @batchnorm_kernel(%arg0: i32, %arg1: memref<8x32xf32, #tpu.memory_space<vmem>>, %arg2: memref<1x32xf32, #tpu.memory_space<vmem>>, %arg3: memref<1x32xf32, #tpu.memory_space<vmem>>, %arg4: memref<8x32xf32, #tpu.memory_space<vmem>>) attributes {dimension_semantics = [#tpu.dimension_semantics<parallel>], iteration_bounds = array<i64: 1>, scalar_prefetch = 0 : i64, scratch_operands = 0 : i64, tpu.core_type = #tpu.core_type<tc>, window_params = [{transform_indices = @transform_0, window_bounds = array<i64: 8, 32>}, {transform_indices = @transform_1, window_bounds = array<i64: 1, 32>}, {transform_indices = @transform_2, window_bounds = array<i64: 1, 32>}, {transform_indices = @transform_3, window_bounds = array<i64: 8, 32>}]} {
    %c0 = arith.constant 0 : index
    %c0_0 = arith.constant 0 : index
    %0 = vector.load %arg1[%c0, %c0_0] : memref<8x32xf32, #tpu.memory_space<vmem>>, vector<8x32xf32>
    %cst = arith.constant dense<0.000000e+00> : vector<32xf32>
    %1 = vector.multi_reduction <add>, %0, %cst [0] : vector<8x32xf32> to vector<32xf32>
    %2 = vector.shape_cast %1 : vector<32xf32> to vector<1x32xf32>
    %cst_1 = arith.constant 8.000000e+00 : f32
    %3 = vector.broadcast %cst_1 : f32 to vector<1x32xf32>
    %4 = arith.divf %2, %3 : vector<1x32xf32>
    %5 = vector.broadcast %4 : vector<1x32xf32> to vector<8x32xf32>
    %6 = arith.subf %0, %5 : vector<8x32xf32>
    %7 = arith.mulf %6, %6 : vector<8x32xf32>
    %cst_2 = arith.constant dense<0.000000e+00> : vector<32xf32>
    %8 = vector.multi_reduction <add>, %7, %cst_2 [0] : vector<8x32xf32> to vector<32xf32>
    %9 = vector.shape_cast %8 : vector<32xf32> to vector<1x32xf32>
    %cst_3 = arith.constant 7.000000e+00 : f32
    %10 = vector.broadcast %cst_3 : f32 to vector<1x32xf32>
    %11 = arith.divf %9, %10 : vector<1x32xf32>
    %cst_4 = arith.constant 9.99999997E-7 : f32
    %12 = vector.broadcast %cst_4 : f32 to vector<1x32xf32>
    %13 = arith.addf %11, %12 : vector<1x32xf32>
    %14 = math.rsqrt %13 : vector<1x32xf32>
    %c0_5 = arith.constant 0 : index
    %c0_6 = arith.constant 0 : index
    %15 = vector.load %arg2[%c0_5, %c0_6] : memref<1x32xf32, #tpu.memory_space<vmem>>, vector<1x32xf32>
    %16 = arith.mulf %15, %14 : vector<1x32xf32>
    %c0_7 = arith.constant 0 : index
    %c0_8 = arith.constant 0 : index
    %17 = vector.load %arg3[%c0_7, %c0_8] : memref<1x32xf32, #tpu.memory_space<vmem>>, vector<1x32xf32>
    %18 = arith.mulf %4, %16 : vector<1x32xf32>
    %19 = arith.subf %17, %18 : vector<1x32xf32>
    %20 = vector.broadcast %16 : vector<1x32xf32> to vector<8x32xf32>
    %21 = arith.mulf %0, %20 : vector<8x32xf32>
    %22 = vector.broadcast %19 : vector<1x32xf32> to vector<8x32xf32>
    %23 = arith.addf %21, %22 : vector<8x32xf32>
    %c0_9 = arith.constant 0 : index
    %c0_10 = arith.constant 0 : index
    %24 = vector.load %arg4[%c0_9, %c0_10] : memref<8x32xf32, #tpu.memory_space<vmem>>, vector<8x32xf32>
    tpu.vector_store %arg4[%c0_9, %c0_10], %23 {strides = array<i32>} : memref<8x32xf32, #tpu.memory_space<vmem>>, vector<8x32xf32>,
    return
  }
  func.func @transform_0(%arg0: i32) -> (i32, i32) {
    %c0_i32 = arith.constant 0 : i32
    %c0_i32_0 = arith.constant 0 : i32
    return %c0_i32, %arg0 : i32, i32
  }
  func.func @transform_1(%arg0: i32) -> (i32, i32) {
    %c0_i32 = arith.constant 0 : i32
    %c0_i32_0 = arith.constant 0 : i32
    return %c0_i32, %arg0 : i32, i32
  }
  func.func @transform_2(%arg0: i32) -> (i32, i32) {
    %c0_i32 = arith.constant 0 : i32
    %c0_i32_0 = arith.constant 0 : i32
    return %c0_i32, %arg0 : i32, i32
  }
  func.func @transform_3(%arg0: i32) -> (i32, i32) {
    %c0_i32 = arith.constant 0 : i32
    %c0_i32_0 = arith.constant 0 : i32
    return %c0_i32, %arg0 : i32, i32
  }
}

</mosaic_0001>

<llo_original>
// kernel: tpu_custom_call.1
$region0: #{tpu_custom_call.1}
  #allocation0 [shape = 'u32[]', space=smem, size = 0x4, offset = 0x4, fixed_abs, tag = 'smem constant byte address 0x4 - core index']
  #allocation1 [shape = 'u32[144,128]{1,0:T(1,128)}', space=vmem, size = 0x12000, scoped, tag = 'internal scratch']
  %s0 = inlined_call_operand.hbm [shape: f32[8,32], index: 0, kind: input, shape index: {}]
  %s1 = inlined_call_operand.vmem [shape: f32[1,32], index: 1, kind: input, shape index: {}]
  %s2 = inlined_call_operand.vmem [shape: f32[1,32], index: 2, kind: input, shape index: {}]
  %s3 = inlined_call_operand.hbm [shape: f32[8,32], index: 3, kind: output, shape index: {}]
  %s4 = sld [smem:[#allocation0]]
  $region26: #{tpu_custom_call.1} parent=0
    _
  %s6 = ssub.s32 1, %s4
  %s7 = scalar_select 0, %s6, %s4
  $region1: #{tpu_custom_call.1} parent=0
    #allocation2 [shape = 'u8[4096]{0}', space=vmem, size = 0x1000, scoped, tag = 'input window, operand 0, single buffered']
    #allocation3 [shape = 's32[1]{0}', space=sflag, size = 0x4, scoped, tag = 'scoped memory for tpu_custom_call.1']
    #allocation4 [shape = 's32[1]{0}', space=sflag, size = 0x4, scoped, tag = 'scoped memory for tpu_custom_call.1']
    #allocation5 [shape = 'u8[4096]{0}', space=vmem, size = 0x1000, scoped, tag = 'output window, operand 0, single buffered']
    %8 = vsyncpa [#allocation3], 0
    %9 = vsyncpa [#allocation4], 0
    // Predicated region
    $region2: #{tpu_custom_call.1} parent=1 // pred_check
      _
    $region3: #{tpu_custom_call.1} parent=1 // pred_check_branch
      %11 = sbr.rel (0) target = $region5
    $region4: #{tpu_custom_call.1} parent=1 // pred_region
      %s13 = ssub.s32 128, 128
      %14 = vsyncadd [#allocation3], %s13
      %s16 = sshll.u32 [#allocation2], 4
      %s17 = int_to_ptr.vmem [resolvable:$true] %s16
      %19 = dma.hbm_to_vmem [thread:$0]  %s0, 128, %s17, [#allocation3]
    $region5: #{tpu_custom_call.1} parent=1 // pred_fallthru
      _
    // Predicated region
    $region6: #{tpu_custom_call.1} parent=1 // pred_check
      _
    $region7: #{tpu_custom_call.1} parent=1 // pred_check_branch
      %21 = sbr.rel (0) target = $region9
    $region8: #{tpu_custom_call.1} parent=1 // pred_region
      _
    $region9: #{tpu_custom_call.1} parent=1 // pred_fallthru
      _
    // Predicated region
    $region10: #{tpu_custom_call.1} parent=1 // pred_check
      _
    $region11: #{tpu_custom_call.1} parent=1 // pred_check_branch
      %23 = sbr.rel (0) target = $region13
    $region12: #{tpu_custom_call.1} parent=1 // pred_region
      _
    $region13: #{tpu_custom_call.1} parent=1 // pred_fallthru
      _
    // Predicated region
    $region14: #{tpu_custom_call.1} parent=1 // pred_check
      _
    $region15: #{tpu_custom_call.1} parent=1 // pred_check_branch
      %25 = sbr.rel (0) target = $region17
    $region16: #{tpu_custom_call.1} parent=1 // pred_region
      %26 = dma.done [#allocation3], 128
    $region17: #{tpu_custom_call.1} parent=1 // pred_fallthru
      _
    %v27 = vld [vmem:[#allocation2] sm:$0xff]
    %vm28 = vcmask 261120
    %v29 = vsel %vm28, %v27, 0.0
    %v30 = vrot.slane %v29, 4
    %v31 = vadd.f32 %v29, %v30
    %v32 = vrot.slane %v31, 2
    %v33 = vadd.f32 %v31, %v32
    %v34 = vrot.slane %v33, 1
    %v35 = vadd.f32 %v33, %v34
    %v36 = vrcp.pop 8.0
    %v37 = vmul.f32 %v35, %v36
    %v38 = vsub.f32 %v27, %v37
    %v39 = vmul.f32 %v38, %v38
    %v40 = vsel %vm28, %v39, 0.0
    %v41 = vrot.slane %v40, 4
    %v42 = vadd.f32 %v40, %v41
    %v43 = vrot.slane %v42, 2
    %v44 = vadd.f32 %v42, %v43
    %v45 = vrot.slane %v44, 1
    %v46 = vadd.f32 %v44, %v45
    %v47 = vrcp.pop 7.0
    %v48 = vmul.f32 %v46, %v47
    %v49 = vadd.f32 %v48, 1e-06
    %v50 = vrsqrt.pop %v49
    %v51 = vld [vmem:[%s1] sm:$0x1]
    %v52 = vmul.f32 %v51, %v50
    %v53 = vld [vmem:[%s2] sm:$0x1]
    %v54 = vmul.f32 %v37, %v52
    %v55 = vsub.f32 %v53, %v54
    %v57 = vlaneseq
    %v58 = vshrl.u32 %v57, 7
    %v59 = vsub.s32 0, %v58
    %v60 = vrot.slane %v52, %v59
    %v62 = vmul.f32 %v27, %v60
    %v64 = vlaneseq
    %v65 = vshrl.u32 %v64, 7
    %v66 = vsub.s32 0, %v65
    %v67 = vrot.slane %v55, %v66
    %v69 = vadd.f32 %v62, %v67
    %70 = vst.msk [vmem:[#allocation5] sm:$0xff] %vm28, %v69
    // Predicated region
    $region18: #{tpu_custom_call.1} parent=1 // pred_check
      _
    $region19: #{tpu_custom_call.1} parent=1 // pred_check_branch
      %72 = sbr.rel (0) target = $region21
    $region20: #{tpu_custom_call.1} parent=1 // pred_region
      %s74 = ssub.s32 128, 128
      %75 = vsyncadd [#allocation4], %s74
      %s77 = sshll.u32 [#allocation5], 4
      %s78 = int_to_ptr.vmem [resolvable:$true] %s77
      %80 = dma.vmem_to_hbm [thread:$0]  %s78, 128, %s3, [#allocation4]
    $region21: #{tpu_custom_call.1} parent=1 // pred_fallthru
      _
    // Predicated region
    $region22: #{tpu_custom_call.1} parent=1 // pred_check
      _
    $region23: #{tpu_custom_call.1} parent=1 // pred_check_branch
      %82 = sbr.rel (0) target = $region25
    $region24: #{tpu_custom_call.1} parent=1 // pred_region
      %83 = dma.done [#allocation4], 128
    $region25: #{tpu_custom_call.1} parent=1 // pred_fallthru
      _
    %84 = vsyncpa [#allocation3], 1
    %85 = vsyncpa [#allocation4], 1

</llo_original>
